<compile_context>
chip_gen: v6e
topology: v6e:2x2x1
jax: 0.10.0
libtpu: 0.0.40
codegen_flags: <defaults>
</compile_context>

<pallas_src>
import functools

import jax
import jax.numpy as jnp
from jax import lax
from jax.experimental import pallas as pl
from jax.experimental.pallas import tpu as pltpu


def _round_up(x, m):
    return (x + m - 1) // m * m


def _pad_to(a, shape):
    return jnp.pad(a, [(0, s - d) for s, d in zip(shape, a.shape)])


# ----------------------------------------------------------------------------
# Fused ModifiedTCN forward kernel: all blocks, one batch tile per grid step.
# ----------------------------------------------------------------------------
def fused_tcn_kernel(x_ref, w_ref, b_ref, alpha_ref, *o_refs,
                     kernel_size, dilations, c_pad, width,
                     store_intermediates, use_bf16_matmul):
    """
    x_ref:     (1, C_pad, W)                       zero-padded, batch-folded input
    w_ref:     (n_blocks, 2*C_pad, K*C_pad)        fused conv+residual weights
    b_ref:     (n_blocks, C_pad, 1)                conv biases (zero-padded)
    alpha_ref: (n_blocks,) in SMEM                 PReLU alphas (scalar reads)
    o_refs:    n_blocks (or 1) outputs, each (1, C_pad, W)  lane-dense stores
    """
    cur = x_ref[0].astype(jnp.float32)             # (C_pad, W), stays on-chip
    for blk, d in enumerate(dilations):
        # K rolled views of `cur`, each rolled independently (static positive
        # shift) so the XLU rotates and MXU pushes can interleave.
        tiles = [cur]
        for k in range(1, kernel_size):
            tiles.append(pltpu.roll(cur, shift=width - k * d, axis=1))
        stacked = jnp.concatenate(tiles, axis=0)   # (K*C_pad, W), sublane-stack
        w_blk = w_ref[blk]                         # (2*C_pad, K*C_pad)
        if use_bf16_matmul:
            w_blk = w_blk.astype(jnp.bfloat16)
            stacked = stacked.astype(jnp.bfloat16)
        # ONE MXU matmul per block: rows [0, C_pad) = dilated conv over all K
        # taps; rows [C_pad, 2*C_pad) = 1x1 residual conv of the (K-1)*d-shifted
        # input (its weight sits in the tap-(K-1) column block).
        out = jnp.dot(w_blk, stacked, preferred_element_type=jnp.float32)
        conv = out[:c_pad] + b_ref[blk]            # (C_pad, 1) bcast over lanes
        alpha = alpha_ref[blk]                     # SMEM scalar read
        y = jnp.where(conv > 0, conv, alpha * conv)  # PReLU (f32 on VPU)
        cur = y + out[c_pad:]
        if store_intermediates:
            o_refs[blk][0] = cur.astype(o_refs[blk].dtype)
    if not store_intermediates:
        o_refs[0][0] = cur.astype(o_refs[0].dtype)


def modified_tcn_forward(params, x, *, batch_tile=None, store_intermediates=True,
                         use_bf16_matmul=False):
    """x: (B, n_inputs, T) -> (final_output, [per-block intermediates])."""
    B, c_in0, t_in = x.shape
    n_blocks = len(params)
    ksize = params[0]["kernel_size"]
    dilations = tuple(int(p["dilation"]) for p in params)

    c_pad = _round_up(max([c_in0] + [p["w"].shape[0] for p in params]), 8)
    t_pad = _round_up(t_in, 128)

    if batch_tile is None:
        # Fold batch elements into the matmul lane/N dimension to amortize the
        # per-grid-step overhead and MXU fixed cost; once batch is large enough,
        # keep >=2 parallel grid steps so both of v7x's TensorCores get work
        # (no effect on single-TC v5e/v6e).
        lane_budget = 512
        batch_tile = min(B, max(1, lane_budget // t_pad))
        if B > batch_tile and -(-B // batch_tile) < 2:
            batch_tile = (B + 1) // 2
    n_bt = -(-B // batch_tile)
    b_pad = n_bt * batch_tile
    width = batch_tile * t_pad

    # Build the fused per-block weight: (2*C_pad, K*C_pad).
    w_big = []
    for p in params:
        w = p["w"]                                              # (out, in, K)
        taps = [_pad_to(w[:, :, k], (c_pad, c_pad)) for k in range(ksize)]
        conv_rows = jnp.concatenate(taps, axis=1)               # (C_pad, K*C_pad)
        res_rows = jnp.zeros((c_pad, ksize * c_pad), w.dtype)
        res_rows = res_rows.at[:, (ksize - 1) * c_pad:].set(
            _pad_to(p["w_res"], (c_pad, c_pad)))
        w_big.append(jnp.concatenate([conv_rows, res_rows], axis=0))
    w_stk = jnp.stack(w_big)                                    # (nb, 2C, K*C)
    b_stk = jnp.stack([_pad_to(p["b"][:, None], (c_pad, 1)) for p in params])
    a_stk = jnp.stack([p["alpha"] for p in params])

    # Batch-folded input layout: (n_bt, C_pad, batch_tile * T_pad).
    x_pad = jnp.pad(x, ((0, b_pad - B), (0, c_pad - c_in0), (0, t_pad - t_in)))
    x_fold = x_pad.reshape(n_bt, batch_tile, c_pad, t_pad)
    x_fold = jnp.transpose(x_fold, (0, 2, 1, 3)).reshape(n_bt, c_pad, width)

    n_out = n_blocks if store_intermediates else 1
    kern = functools.partial(fused_tcn_kernel, kernel_size=ksize,
                             dilations=dilations, c_pad=c_pad, width=width,
                             store_intermediates=store_intermediates,
                             use_bf16_matmul=use_bf16_matmul)

    flops = 2 * n_bt * n_blocks * (2 * c_pad) * (ksize * c_pad) * width
    bytes_accessed = 4 * (x_fold.size + w_stk.size + b_stk.size + a_stk.size
                          + n_out * n_bt * c_pad * width)

    # Per-step VMEM working set (double-buffered input/outputs + params); raise
    # the scoped limit explicitly (v5e defaults to 16 MiB) but stay <= v7x's
    # 64 MiB physical VMEM so the same config runs on all generations.
    est = 4 * (2 * c_pad * width
               + 2 * n_out * c_pad * width
               + int(w_stk.size) + int(b_stk.size)) + (1 << 20)
    vmem_limit = int(min(64 << 20, max(32 << 20, 2 * est)))

    # TODO(synk): for long sequences add a halo'd time-tile grid axis (halo =
    # fused receptive field (K-1)*sum(dilations)); size t_tile so
    # 2*(1 + n_out)*c_pad*t_tile*4B + params stays <~32 MiB on v7x (64 MiB
    # physical) and <~64 MiB on v5e/v6e, with t_tile >= 512 lanes.
    outs = pl.pallas_call(
        kern,
        out_shape=tuple(jax.ShapeDtypeStruct((n_bt, c_pad, width), x.dtype)
                        for _ in range(n_out)),
        grid=(n_bt,),
        in_specs=[
            pl.BlockSpec((1, c_pad, width), lambda g: (g, 0, 0)),
            pl.BlockSpec((n_blocks, 2 * c_pad, ksize * c_pad),
                         lambda g: (0, 0, 0)),
            pl.BlockSpec((n_blocks, c_pad, 1), lambda g: (0, 0, 0)),
            pl.BlockSpec(memory_space=pltpu.MemorySpace.SMEM),
        ],
        out_specs=tuple(pl.BlockSpec((1, c_pad, width), lambda g: (g, 0, 0))
                        for _ in range(n_out)),
        compiler_params=pltpu.CompilerParams(
            dimension_semantics=("parallel",),
            vmem_limit_bytes=vmem_limit),
        cost_estimate=pl.CostEstimate(flops=flops, transcendentals=0,
                                      bytes_accessed=bytes_accessed),
    )(x_fold, w_stk, b_stk, a_stk)

    # Un-fold batch from lanes and slice back to exact per-block shapes.
    def unfold(o):
        o = o.reshape(n_bt, c_pad, batch_tile, t_pad)
        o = jnp.transpose(o, (0, 2, 1, 3)).reshape(b_pad, c_pad, t_pad)
        return o[:B]

    t_valid = []
    t_cur = t_in
    for d in dilations:
        t_cur -= (ksize - 1) * d
        t_valid.append(t_cur)

    if store_intermediates:
        intermediates = []
        for i, p in enumerate(params):
            c_out = p["w"].shape[0]
            intermediates.append(unfold(outs[i])[:, :c_out, :t_valid[i]])
        return intermediates[-1], intermediates
    c_out = params[-1]["w"].shape[0]
    final = unfold(outs[0])[:, :c_out, :t_valid[-1]]
    return final, []


# ----------------------------------------------------------------------------
# Parameter construction (matches the PyTorch module's init).
# ----------------------------------------------------------------------------
def xavier_uniform(key, shape, fan_in, fan_out, dtype=jnp.float32):
    bound = (6.0 / (fan_in + fan_out)) ** 0.5
    return jax.random.uniform(key, shape, dtype, minval=-bound, maxval=bound)


def init_modified_tcn(key, n_inputs, n_outputs, kernel_size, n_blocks,
                      n_channels, dilation_growth):
    params = []
    for i in range(n_blocks):
        dilation = dilation_growth ** i
        in_ch = n_inputs if i == 0 else n_channels
        out_ch = n_outputs if i == n_blocks - 1 else n_channels
        key, k1, k2 = jax.random.split(key, 3)
        w = xavier_uniform(k1, (out_ch, in_ch, kernel_size),
                           fan_in=in_ch * kernel_size,
                           fan_out=out_ch * kernel_size)
        b = jnp.zeros((out_ch,), jnp.float32)          # nn.init.zeros_
        alpha = jnp.array(0.25, jnp.float32)           # PReLU default
        w_res = xavier_uniform(k2, (out_ch, in_ch), fan_in=in_ch, fan_out=out_ch)
        params.append(dict(w=w, b=b, alpha=alpha, w_res=w_res,
                           kernel_size=kernel_size, dilation=dilation))
    return params


# ----------------------------------------------------------------------------
# Pure-JAX reference (correctness check).
# ----------------------------------------------------------------------------
def tcn_block_ref(x, p):
    K, d = p["kernel_size"], p["dilation"]
    conv = lax.conv_general_dilated(
        x, p["w"], window_strides=(1,), padding="VALID",
        rhs_dilation=(d,), dimension_numbers=("NCH", "OIH", "NCH"))
    conv = conv + p["b"][None, :, None]
    act = jnp.where(conv > 0, conv, p["alpha"] * conv)
    res = jnp.einsum("oc,bct->bot", p["w_res"], x)[..., (K - 1) * d:]
    return act + res


def modified_tcn_ref(params, x):
    outs = []
    for p in params:
        x = tcn_block_ref(x, p)
        outs.append(x)
    return x, outs


if __name__ == "__main__":
    # Small ModifiedTCN config
    n_inputs, n_outputs = 4, 4
    kernel_size, n_blocks, n_channels, dilation_growth = 3, 3, 8, 2

    key = jax.random.PRNGKey(0)
    key, pkey, xkey = jax.random.split(key, 3)
    params = init_modified_tcn(pkey, n_inputs, n_outputs, kernel_size,
                               n_blocks, n_channels, dilation_growth)

    B, T = 2, 64
    x = jax.random.normal(xkey, (B, n_inputs, T), jnp.float32)

    out, intermediates = modified_tcn_forward(params, x)
    out = jax.block_until_ready(out)
    intermediates = [jax.block_until_ready(o) for o in intermediates]

    ref_out, ref_inter = modified_tcn_ref(params, x)
    assert out.shape == ref_out.shape, (out.shape, ref_out.shape)
    for a, b in zip(intermediates, ref_inter):
        assert a.shape == b.shape, (a.shape, b.shape)
        assert jnp.allclose(a, b, atol=1e-4, rtol=1e-4), "block output mismatch"
    assert jnp.allclose(out, ref_out, atol=1e-4, rtol=1e-4), "final output mismatch"

    # Final-output-only path (skips intermediate HBM writebacks).
    out_only, _ = modified_tcn_forward(params, x, store_intermediates=False)
    out_only = jax.block_until_ready(out_only)
    assert jnp.allclose(out_only, ref_out, atol=1e-4, rtol=1e-4), "final-only mismatch"

    print("KERNEL_OK")
</pallas_src>

<mosaic_0001>
module attributes {stable_mosaic.version = 11 : i64} {
  func.func @fused_tcn_kernel(%arg0: i32, %arg1: memref<1x8x256xf32, #tpu.memory_space<vmem>>, %arg2: memref<3x16x24xf32, #tpu.memory_space<vmem>>, %arg3: memref<3x8x1xf32, #tpu.memory_space<vmem>>, %arg4: memref<3xf32, #tpu.memory_space<smem>>, %arg5: memref<1x8x256xf32, #tpu.memory_space<vmem>>, %arg6: memref<1x8x256xf32, #tpu.memory_space<vmem>>, %arg7: memref<1x8x256xf32, #tpu.memory_space<vmem>>) attributes {dimension_semantics = [#tpu.dimension_semantics<parallel>], iteration_bounds = array<i64: 1>, scalar_prefetch = 0 : i64, scratch_operands = 0 : i64, tpu.core_type = #tpu.core_type<tc>, window_params = [{transform_indices = @transform_0, window_bounds = array<i64: 1, 8, 256>}, {pipeline_mode = #tpu.pipeline_mode<synchronous>, transform_indices = @transform_1, window_bounds = array<i64: 3, 16, 24>}, {pipeline_mode = #tpu.pipeline_mode<synchronous>, transform_indices = @transform_2, window_bounds = array<i64: 3, 8, 1>}, {transform_indices = @transform_3, window_bounds = array<i64: 3>}, {transform_indices = @transform_4, window_bounds = array<i64: 1, 8, 256>}, {transform_indices = @transform_5, window_bounds = array<i64: 1, 8, 256>}, {transform_indices = @transform_6, window_bounds = array<i64: 1, 8, 256>}]} {
    %c0 = arith.constant 0 : index
    %c0_0 = arith.constant 0 : index
    %c0_1 = arith.constant 0 : index
    %0 = vector.load %arg1[%c0, %c0_0, %c0_1] : memref<1x8x256xf32, #tpu.memory_space<vmem>>, vector<1x8x256xf32>
    %1 = vector.shape_cast %0 : vector<1x8x256xf32> to vector<8x256xf32>
    %c255_i32 = arith.constant 255 : i32
    %2 = tpu.dynamic_rotate %1 by %c255_i32 dim 1 : vector<8x256xf32>, i32 -> vector<8x256xf32>
    %c254_i32 = arith.constant 254 : i32
    %3 = tpu.dynamic_rotate %1 by %c254_i32 dim 1 : vector<8x256xf32>, i32 -> vector<8x256xf32>
    %4 = tpu.concatenate %1, %2, %3 in 0 : vector<8x256xf32>, vector<8x256xf32>, vector<8x256xf32> -> vector<24x256xf32>
    %c0_2 = arith.constant 0 : index
    %c0_3 = arith.constant 0 : index
    %c0_4 = arith.constant 0 : index
    %5 = vector.load %arg2[%c0_2, %c0_3, %c0_4] : memref<3x16x24xf32, #tpu.memory_space<vmem>>, vector<1x16x24xf32>
    %6 = vector.shape_cast %5 : vector<1x16x24xf32> to vector<16x24xf32>
    %cst = arith.constant dense<0.000000e+00> : vector<16x256xf32>
    %7 = tpu.matmul %6, %4, %cst {dimension_numbers = #tpu.dot_dimension_numbers<[1], [0], [0], [1], [0, 0, 1, 1], [], []>} : vector<16x24xf32>, vector<24x256xf32>, vector<16x256xf32> -> vector<16x256xf32>
    %8 = vector.extract_strided_slice %7 {offsets = [0, 0], sizes = [8, 256], strides = [1, 1]} : vector<16x256xf32> to vector<8x256xf32>
    %c0_5 = arith.constant 0 : index
    %c0_6 = arith.constant 0 : index
    %c0_7 = arith.constant 0 : index
    %9 = vector.load %arg3[%c0_5, %c0_6, %c0_7] : memref<3x8x1xf32, #tpu.memory_space<vmem>>, vector<1x8x1xf32>
    %10 = vector.shape_cast %9 : vector<1x8x1xf32> to vector<8x1xf32>
    %11 = vector.broadcast %10 : vector<8x1xf32> to vector<8x256xf32>
    %12 = arith.addf %8, %11 : vector<8x256xf32>
    %c0_8 = arith.constant 0 : index
    %13 = memref.load %arg4[%c0_8] : memref<3xf32, #tpu.memory_space<smem>>
    %cst_9 = arith.constant 0.000000e+00 : f32
    %14 = vector.broadcast %cst_9 : f32 to vector<8x256xf32>
    %15 = arith.cmpf ogt, %12, %14 : vector<8x256xf32>
    %16 = vector.broadcast %13 : f32 to vector<8x256xf32>
    %17 = arith.mulf %16, %12 : vector<8x256xf32>
    %18 = arith.select %15, %12, %17 : vector<8x256xi1>, vector<8x256xf32>
    %19 = vector.extract_strided_slice %7 {offsets = [8, 0], sizes = [8, 256], strides = [1, 1]} : vector<16x256xf32> to vector<8x256xf32>
    %20 = arith.addf %18, %19 : vector<8x256xf32>
    %c0_10 = arith.constant 0 : index
    %c0_11 = arith.constant 0 : index
    %c0_12 = arith.constant 0 : index
    %21 = vector.load %arg5[%c0_10, %c0_11, %c0_12] : memref<1x8x256xf32, #tpu.memory_space<vmem>>, vector<1x8x256xf32>
    %22 = vector.shape_cast %21 : vector<1x8x256xf32> to vector<8x256xf32>
    %23 = vector.shape_cast %20 : vector<8x256xf32> to vector<1x8x256xf32>
    tpu.vector_store %arg5[%c0_10, %c0_11, %c0_12], %23 {strides = array<i32>} : memref<1x8x256xf32, #tpu.memory_space<vmem>>, vector<1x8x256xf32>,
    %c254_i32_13 = arith.constant 254 : i32
    %24 = tpu.dynamic_rotate %20 by %c254_i32_13 dim 1 : vector<8x256xf32>, i32 -> vector<8x256xf32>
    %c252_i32 = arith.constant 252 : i32
    %25 = tpu.dynamic_rotate %20 by %c252_i32 dim 1 : vector<8x256xf32>, i32 -> vector<8x256xf32>
    %26 = tpu.concatenate %20, %24, %25 in 0 : vector<8x256xf32>, vector<8x256xf32>, vector<8x256xf32> -> vector<24x256xf32>
    %c1 = arith.constant 1 : index
    %c0_14 = arith.constant 0 : index
    %c0_15 = arith.constant 0 : index
    %27 = vector.load %arg2[%c1, %c0_14, %c0_15] : memref<3x16x24xf32, #tpu.memory_space<vmem>>, vector<1x16x24xf32>
    %28 = vector.shape_cast %27 : vector<1x16x24xf32> to vector<16x24xf32>
    %cst_16 = arith.constant dense<0.000000e+00> : vector<16x256xf32>
    %29 = tpu.matmul %28, %26, %cst_16 {dimension_numbers = #tpu.dot_dimension_numbers<[1], [0], [0], [1], [0, 0, 1, 1], [], []>} : vector<16x24xf32>, vector<24x256xf32>, vector<16x256xf32> -> vector<16x256xf32>
    %30 = vector.extract_strided_slice %29 {offsets = [0, 0], sizes = [8, 256], strides = [1, 1]} : vector<16x256xf32> to vector<8x256xf32>
    %c1_17 = arith.constant 1 : index
    %c0_18 = arith.constant 0 : index
    %c0_19 = arith.constant 0 : index
    %31 = vector.load %arg3[%c1_17, %c0_18, %c0_19] : memref<3x8x1xf32, #tpu.memory_space<vmem>>, vector<1x8x1xf32>
    %32 = vector.shape_cast %31 : vector<1x8x1xf32> to vector<8x1xf32>
    %33 = vector.broadcast %32 : vector<8x1xf32> to vector<8x256xf32>
    %34 = arith.addf %30, %33 : vector<8x256xf32>
    %c1_20 = arith.constant 1 : index
    %35 = memref.load %arg4[%c1_20] : memref<3xf32, #tpu.memory_space<smem>>
    %cst_21 = arith.constant 0.000000e+00 : f32
    %36 = vector.broadcast %cst_21 : f32 to vector<8x256xf32>
    %37 = arith.cmpf ogt, %34, %36 : vector<8x256xf32>
    %38 = vector.broadcast %35 : f32 to vector<8x256xf32>
    %39 = arith.mulf %38, %34 : vector<8x256xf32>
    %40 = arith.select %37, %34, %39 : vector<8x256xi1>, vector<8x256xf32>
    %41 = vector.extract_strided_slice %29 {offsets = [8, 0], sizes = [8, 256], strides = [1, 1]} : vector<16x256xf32> to vector<8x256xf32>
    %42 = arith.addf %40, %41 : vector<8x256xf32>
    %c0_22 = arith.constant 0 : index
    %c0_23 = arith.constant 0 : index
    %c0_24 = arith.constant 0 : index
    %43 = vector.load %arg6[%c0_22, %c0_23, %c0_24] : memref<1x8x256xf32, #tpu.memory_space<vmem>>, vector<1x8x256xf32>
    %44 = vector.shape_cast %43 : vector<1x8x256xf32> to vector<8x256xf32>
    %45 = vector.shape_cast %42 : vector<8x256xf32> to vector<1x8x256xf32>
    tpu.vector_store %arg6[%c0_22, %c0_23, %c0_24], %45 {strides = array<i32>} : memref<1x8x256xf32, #tpu.memory_space<vmem>>, vector<1x8x256xf32>,
    %c252_i32_25 = arith.constant 252 : i32
    %46 = tpu.dynamic_rotate %42 by %c252_i32_25 dim 1 : vector<8x256xf32>, i32 -> vector<8x256xf32>
    %c248_i32 = arith.constant 248 : i32
    %47 = tpu.dynamic_rotate %42 by %c248_i32 dim 1 : vector<8x256xf32>, i32 -> vector<8x256xf32>
    %48 = tpu.concatenate %42, %46, %47 in 0 : vector<8x256xf32>, vector<8x256xf32>, vector<8x256xf32> -> vector<24x256xf32>
    %c2 = arith.constant 2 : index
    %c0_26 = arith.constant 0 : index
    %c0_27 = arith.constant 0 : index
    %49 = vector.load %arg2[%c2, %c0_26, %c0_27] : memref<3x16x24xf32, #tpu.memory_space<vmem>>, vector<1x16x24xf32>
    %50 = vector.shape_cast %49 : vector<1x16x24xf32> to vector<16x24xf32>
    %cst_28 = arith.constant dense<0.000000e+00> : vector<16x256xf32>
    %51 = tpu.matmul %50, %48, %cst_28 {dimension_numbers = #tpu.dot_dimension_numbers<[1], [0], [0], [1], [0, 0, 1, 1], [], []>} : vector<16x24xf32>, vector<24x256xf32>, vector<16x256xf32> -> vector<16x256xf32>
    %52 = vector.extract_strided_slice %51 {offsets = [0, 0], sizes = [8, 256], strides = [1, 1]} : vector<16x256xf32> to vector<8x256xf32>
    %c2_29 = arith.constant 2 : index
    %c0_30 = arith.constant 0 : index
    %c0_31 = arith.constant 0 : index
    %53 = vector.load %arg3[%c2_29, %c0_30, %c0_31] : memref<3x8x1xf32, #tpu.memory_space<vmem>>, vector<1x8x1xf32>
    %54 = vector.shape_cast %53 : vector<1x8x1xf32> to vector<8x1xf32>
    %55 = vector.broadcast %54 : vector<8x1xf32> to vector<8x256xf32>
    %56 = arith.addf %52, %55 : vector<8x256xf32>
    %c2_32 = arith.constant 2 : index
    %57 = memref.load %arg4[%c2_32] : memref<3xf32, #tpu.memory_space<smem>>
    %cst_33 = arith.constant 0.000000e+00 : f32
    %58 = vector.broadcast %cst_33 : f32 to vector<8x256xf32>
    %59 = arith.cmpf ogt, %56, %58 : vector<8x256xf32>
    %60 = vector.broadcast %57 : f32 to vector<8x256xf32>
    %61 = arith.mulf %60, %56 : vector<8x256xf32>
    %62 = arith.select %59, %56, %61 : vector<8x256xi1>, vector<8x256xf32>
    %63 = vector.extract_strided_slice %51 {offsets = [8, 0], sizes = [8, 256], strides = [1, 1]} : vector<16x256xf32> to vector<8x256xf32>
    %64 = arith.addf %62, %63 : vector<8x256xf32>
    %c0_34 = arith.constant 0 : index
    %c0_35 = arith.constant 0 : index
    %c0_36 = arith.constant 0 : index
    %65 = vector.load %arg7[%c0_34, %c0_35, %c0_36] : memref<1x8x256xf32, #tpu.memory_space<vmem>>, vector<1x8x256xf32>
    %66 = vector.shape_cast %65 : vector<1x8x256xf32> to vector<8x256xf32>
    %67 = vector.shape_cast %64 : vector<8x256xf32> to vector<1x8x256xf32>
    tpu.vector_store %arg7[%c0_34, %c0_35, %c0_36], %67 {strides = array<i32>} : memref<1x8x256xf32, #tpu.memory_space<vmem>>, vector<1x8x256xf32>,
    return
  }
  func.func @transform_0(%arg0: i32) -> (i32, i32, i32) {
    %c0_i32 = arith.constant 0 : i32
    %c0_i32_0 = arith.constant 0 : i32
    %c0_i32_1 = arith.constant 0 : i32
    return %arg0, %c0_i32, %c0_i32_0 : i32, i32, i32
  }
  func.func @transform_1(%arg0: i32) -> (i32, i32, i32) {
    %c0_i32 = arith.constant 0 : i32
    %c0_i32_0 = arith.constant 0 : i32
    %c0_i32_1 = arith.constant 0 : i32
    %c0_i32_2 = arith.constant 0 : i32
    return %c0_i32, %c0_i32_0, %c0_i32_1 : i32, i32, i32
  }
  func.func @transform_2(%arg0: i32) -> (i32, i32, i32) {
    %c0_i32 = arith.constant 0 : i32
    %c0_i32_0 = arith.constant 0 : i32
    %c0_i32_1 = arith.constant 0 : i32
    %c0_i32_2 = arith.constant 0 : i32
    return %c0_i32, %c0_i32_0, %c0_i32_1 : i32, i32, i32
  }
  func.func @transform_3(%arg0: i32) -> i32 {
    %c0_i32 = arith.constant 0 : i32
    %c0_i32_0 = arith.constant 0 : i32
    return %c0_i32 : i32
  }
  func.func @transform_4(%arg0: i32) -> (i32, i32, i32) {
    %c0_i32 = arith.constant 0 : i32
    %c0_i32_0 = arith.constant 0 : i32
    %c0_i32_1 = arith.constant 0 : i32
    return %arg0, %c0_i32, %c0_i32_0 : i32, i32, i32
  }
  func.func @transform_5(%arg0: i32) -> (i32, i32, i32) {
    %c0_i32 = arith.constant 0 : i32
    %c0_i32_0 = arith.constant 0 : i32
    %c0_i32_1 = arith.constant 0 : i32
    return %arg0, %c0_i32, %c0_i32_0 : i32, i32, i32
  }
  func.func @transform_6(%arg0: i32) -> (i32, i32, i32) {
    %c0_i32 = arith.constant 0 : i32
    %c0_i32_0 = arith.constant 0 : i32
    %c0_i32_1 = arith.constant 0 : i32
    return %arg0, %c0_i32, %c0_i32_0 : i32, i32, i32
  }
}

</mosaic_0001>

<llo_original>
// kernel: tpu_custom_call.1
$region0: #{tpu_custom_call.1}
  #allocation0 [shape = 'u32[]', space=smem, size = 0x4, offset = 0x4, fixed_abs, tag = 'smem constant byte address 0x4 - core index']
  #allocation1 [shape = 'u32[144,128]{1,0:T(1,128)}', space=vmem, size = 0x12000, scoped, tag = 'internal scratch']
  %s0 = inlined_call_operand.vmem [shape: f32[1,8,256], index: 0, kind: input, shape index: {}]
  %s1 = inlined_call_operand.hbm [shape: f32[3,16,24], index: 1, kind: input, shape index: {}]
  %s2 = inlined_call_operand.vmem [shape: f32[3,8,1], index: 2, kind: input, shape index: {}]
  %s3 = inlined_call_operand.vmem [shape: f32[3], index: 3, kind: input, shape index: {}]
  %s4 = inlined_call_operand.hbm [shape: f32[1,8,256], index: 4, kind: output, shape index: {0}]
  %s5 = inlined_call_operand.hbm [shape: f32[1,8,256], index: 5, kind: output, shape index: {1}]
  %s6 = inlined_call_operand.hbm [shape: f32[1,8,256], index: 6, kind: output, shape index: {2}]
  %7 = xla_tuple %s4, %s5, %s6
  %s8 = sld [smem:[#allocation0]]
  $region50: #{tpu_custom_call.1} parent=0
    _
  %s10 = ssub.s32 1, %s8
  %s11 = scalar_select 0, %s10, %s8
  $region1: #{tpu_custom_call.1} parent=0
    #allocation2 [shape = 'u8[24576]{0}', space=vmem, size = 0x6000, scoped, tag = 'input window, operand 1, single buffered']
    #allocation3 [shape = 's32[1]{0}', space=sflag, size = 0x4, scoped, tag = 'scoped memory for tpu_custom_call.1']
    #allocation4 [shape = 's32[1]{0}', space=sflag, size = 0x4, scoped, tag = 'scoped memory for tpu_custom_call.1']
    #allocation5 [shape = 's32[1]{0}', space=sflag, size = 0x4, scoped, tag = 'scoped memory for tpu_custom_call.1']
    #allocation6 [shape = 'u8[512]{0}', space=smem, size = 0x200, scoped, tag = 'input window, operand 3, single buffered']
    #allocation7 [shape = 'u8[8192]{0}', space=vmem, size = 0x2000, scoped, tag = 'output window, operand 0, single buffered']
    #allocation8 [shape = 'u8[8192]{0}', space=vmem, size = 0x2000, scoped, tag = 'output window, operand 1, single buffered']
    #allocation9 [shape = 's32[1]{0}', space=sflag, size = 0x4, scoped, tag = 'scoped memory for tpu_custom_call.1']
    #allocation10 [shape = 'u8[8192]{0}', space=vmem, size = 0x2000, scoped, tag = 'output window, operand 2, single buffered']
    %12 = vsyncpa [#allocation3], 0
    %13 = vsyncpa [#allocation5], 0
    %14 = vsyncpa [#allocation4], 0
    %15 = vsyncpa [#allocation9], 0
    // Predicated region
    $region2: #{tpu_custom_call.1} parent=1 // pred_check
      _
    $region3: #{tpu_custom_call.1} parent=1 // pred_check_branch
      %17 = sbr.rel (0) target = $region5
    $region4: #{tpu_custom_call.1} parent=1 // pred_region
      _
    $region5: #{tpu_custom_call.1} parent=1 // pred_fallthru
      _
    // Predicated region
    $region6: #{tpu_custom_call.1} parent=1 // pred_check
      _
    $region7: #{tpu_custom_call.1} parent=1 // pred_check_branch
      %19 = sbr.rel (0) target = $region9
    $region8: #{tpu_custom_call.1} parent=1 // pred_region
      %s21 = ssub.s32 768, 768
      %22 = vsyncadd [#allocation3], %s21
      %s23 = sshll.u32 [#allocation2], 4
      %s24 = int_to_ptr.vmem [resolvable:$true] %s23
      %29 = dma.hbm_to_vmem [thread:$0]  %s1, 768, %s24, [#allocation3], 128, 128, 8
    $region9: #{tpu_custom_call.1} parent=1 // pred_fallthru
      _
    // Predicated region
    $region10: #{tpu_custom_call.1} parent=1 // pred_check
      _
    $region11: #{tpu_custom_call.1} parent=1 // pred_check_branch
      %31 = sbr.rel (0) target = $region13
    $region12: #{tpu_custom_call.1} parent=1 // pred_region
      _
    $region13: #{tpu_custom_call.1} parent=1 // pred_fallthru
      _
    // Predicated region
    $region14: #{tpu_custom_call.1} parent=1 // pred_check
      _
    $region15: #{tpu_custom_call.1} parent=1 // pred_check_branch
      %33 = sbr.rel (0) target = $region17
    $region16: #{tpu_custom_call.1} parent=1 // pred_region
      %s35 = ssub.s32 16, 16
      %36 = vsyncadd [#allocation5], %s35
      %s38 = sshll.u32 %s3, 4
      %s39 = int_to_ptr.vmem [resolvable:$true] %s38
      %41 = dma.vmem_to_smem %s39, 16, [#allocation6], [#allocation5]
    $region17: #{tpu_custom_call.1} parent=1 // pred_fallthru
      _
    // Predicated region
    $region18: #{tpu_custom_call.1} parent=1 // pred_check
      _
    $region19: #{tpu_custom_call.1} parent=1 // pred_check_branch
      %43 = sbr.rel (0) target = $region21
    $region20: #{tpu_custom_call.1} parent=1 // pred_region
      %44 = dma.done [#allocation3], 768
    $region21: #{tpu_custom_call.1} parent=1 // pred_fallthru
      _
    // Predicated region
    $region22: #{tpu_custom_call.1} parent=1 // pred_check
      _
    $region23: #{tpu_custom_call.1} parent=1 // pred_check_branch
      %46 = sbr.rel (0) target = $region25
    $region24: #{tpu_custom_call.1} parent=1 // pred_region
      %47 = dma.done [#allocation5], 16
    $region25: #{tpu_custom_call.1} parent=1 // pred_fallthru
      _
    %48 = sfence
    %v49 = vld [vmem:[%s0] sm:$0xff]
    %v50 = vld [vmem:[%s0 + $0x8] sm:$0xff]
    %51 = vrot.lane.b32.xlu0 %v49, 127
    %v52 = vpop.permute.xlu0 %51
    %53 = vrot.lane.b32.xlu0 %v50, 127
    %v54 = vpop.permute.xlu0 %53
    %v55 = vlaneseq
    %v56 = vand.u32 %v55, 127
    %vm57 = vcmp.lt.s32.totalorder %v56, 127
    %v58 = vsel %vm57, %v52, %v54
    %v59 = vsel %vm57, %v54, %v52
    %60 = vrot.lane.b32.xlu0 %v49, 126
    %v61 = vpop.permute.xlu0 %60
    %62 = vrot.lane.b32.xlu0 %v50, 126
    %v63 = vpop.permute.xlu0 %62
    %vm64 = vcmp.lt.s32.totalorder %v56, 126
    %v65 = vsel %vm64, %v61, %v63
    %v66 = vsel %vm64, %v63, %v61
    %v67 = vld [vmem:[#allocation2] sm:$0xff]
    %v68 = vld [vmem:[#allocation2 + $0x8] sm:$0xff]
    %vm69 = vcmask 195584
    %v71 = vsel %vm69, %v67, 0
    %v74 = vsel %vm69, %v68, 0
    %76 = vmatprep.subr.mxu0 0.0
    %77 = vmatpush1.msra.mxu0 0.0
    %78 = vmatprep.subr.mxu0 0.0
    %79 = vmatpush1.msra.mxu0 0.0
    %80 = vmatprep.subr.mxu0 0.0
    %81 = vmatpush1.msra.mxu0 0.0
    %82 = vmatprep.subr.mxu0 0.0
    %83 = vmatpush1.msra.mxu0 0.0
    %84 = vmatprep.subr.mxu0 0.0
    %85 = vmatpush1.msra.mxu0 0.0
    %86 = vmatprep.subr.mxu0 0.0
    %87 = vmatpush1.msra.mxu0 0.0
    %88 = vmatprep.subr.mxu0 0.0
    %89 = vmatpush1.msra.mxu0 0.0
    %90 = vmatprep.subr.mxu0 0.0
    %91 = vmatpush1.msra.mxu0 0.0
    %92 = vmatprep.subr.mxu0 0.0
    %93 = vmatpush1.msra.mxu0 0.0
    %94 = vmatprep.subr.mxu0 0.0
    %95 = vmatpush1.msra.mxu0 0.0
    %96 = vmatprep.subr.mxu0 0.0
    %97 = vmatpush1.msra.mxu0 0.0
    %98 = vmatprep.subr.mxu0 0.0
    %99 = vmatpush1.msra.mxu0 0.0
    %100 = vmatprep.subr.mxu0 0.0
    %101 = vmatpush1.msra.mxu0 0.0
    %102 = vmatprep.subr.mxu0 %v66
    %103 = vmatpush1.msra.mxu0 %v65
    %104 = vmatprep.subr.mxu0 %v59
    %105 = vmatpush1.msra.mxu0 %v58
    %106 = vmatprep.subr.mxu0 %v50
    %107 = vmatpush1.msra.mxu0 %v49
    %108 = vmatprep.subr.mxu0 0.0
    %109 = vmatpush2.msra.mxu0 0.0
    %110 = vmatprep.subr.mxu0 0.0
    %111 = vmatpush2.msra.mxu0 0.0
    %112 = vmatprep.subr.mxu0 0.0
    %113 = vmatpush2.msra.mxu0 0.0
    %114 = vmatprep.subr.mxu0 0.0
    %115 = vmatpush2.msra.mxu0 0.0
    %116 = vmatprep.subr.mxu0 0.0
    %117 = vmatpush2.msra.mxu0 0.0
    %118 = vmatprep.subr.mxu0 0.0
    %119 = vmatpush2.msra.mxu0 0.0
    %120 = vmatprep.subr.mxu0 0.0
    %121 = vmatpush2.msra.mxu0 0.0
    %122 = vmatprep.subr.mxu0 0.0
    %123 = vmatpush2.msra.mxu0 0.0
    %124 = vmatprep.subr.mxu0 0.0
    %125 = vmatpush2.msra.mxu0 0.0
    %126 = vmatprep.subr.mxu0 0.0
    %127 = vmatpush2.msra.mxu0 0.0
    %128 = vmatprep.subr.mxu0 0.0
    %129 = vmatpush2.msra.mxu0 0.0
    %130 = vmatprep.subr.mxu0 0.0
    %131 = vmatpush2.msra.mxu0 0.0
    %132 = vmatprep.subr.mxu0 0.0
    %133 = vmatpush2.msra.mxu0 0.0
    %134 = vmatprep.subr.mxu0 0.0
    %135 = vmatpush2.msra.mxu0 0.0
    %136 = vmatprep.subr.mxu0 0.0
    %137 = vmatpush2.msra.mxu0 0.0
    %138 = vmatprep.subr.mxu0 0.0
    %139 = vmatpush2.msra.mxu0 0.0
    %140 = vmatprep.mubr.f32.mxu0 0.0
    %141 = vmatmul.mubr.f32.gmra.mxu0 %v71
    %v142 = vpop.f32.mrf.mxu0
    %v143 = vadd.f32 0.0, %v142
    %v144 = vpop.f32.mrf.mxu0
    %v145 = vadd.f32 0.0, %v144
    %146 = vmatprep.mubr.f32.mxu0 0.0
    %147 = vmatmul.mubr.f32.gmra.mxu0 %v74
    %v148 = vpop.f32.mrf.mxu0
    %v149 = vadd.f32 0.0, %v148
    %v150 = vpop.f32.mrf.mxu0
    %v151 = vadd.f32 0.0, %v150
    %152 = vdwg.mxu0
    %v153 = vld [vmem:[%s2] sm:$0xff]
    %155 = vset.pattern.permute.xlu0 0
    %156 = vperm.xlu0 %155, %v153
    %v157 = vpop.permute.xlu0 %156
    %v159 = vadd.f32 %v143, %v157
    %v160 = vadd.f32 %v145, %v157
    %s161 = sld [smem:[#allocation6]]
    %vm162 = vcmp.gt.f32.partialorder %v159, 0.0
    %vm163 = vcmp.gt.f32.partialorder %v160, 0.0
    %v164 = vstv %s161
    %v165 = vmul.f32 %v164, %v159
    %v166 = vmul.f32 %v164, %v160
    %v167 = vsel %vm162, %v159, %v165
    %v168 = vsel %vm163, %v160, %v166
    %v169 = vadd.f32 %v167, %v149
    %v170 = vadd.f32 %v168, %v151
    %171 = vst [vmem:[#allocation7] sm:$0xff] %v169
    %172 = vst [vmem:[#allocation7 + $0x8] sm:$0xff] %v170
    %173 = vrot.lane.b32.xlu0 %v169, 126
    %v174 = vpop.permute.xlu0 %173
    %175 = vrot.lane.b32.xlu0 %v170, 126
    %v176 = vpop.permute.xlu0 %175
    %v177 = vsel %vm64, %v174, %v176
    %v178 = vsel %vm64, %v176, %v174
    %179 = vrot.lane.b32.xlu0 %v169, 124
    %v180 = vpop.permute.xlu0 %179
    %181 = vrot.lane.b32.xlu0 %v170, 124
    %v182 = vpop.permute.xlu0 %181
    %vm183 = vcmp.lt.s32.totalorder %v56, 124
    %v184 = vsel %vm183, %v180, %v182
    %v185 = vsel %vm183, %v182, %v180
    %s186 = scalar_lea.vmem [#allocation2], 16
    %v187 = vld [vmem:[%s186] sm:$0xff]
    %v188 = vld [vmem:[%s186 + $0x8] sm:$0xff]
    %v190 = vsel %vm69, %v187, 0
    %v193 = vsel %vm69, %v188, 0
    %195 = vmatprep.subr.mxu0 0.0
    %196 = vmatpush1.msra.mxu0 0.0
    %197 = vmatprep.subr.mxu0 0.0
    %198 = vmatpush1.msra.mxu0 0.0
    %199 = vmatprep.subr.mxu0 0.0
    %200 = vmatpush1.msra.mxu0 0.0
    %201 = vmatprep.subr.mxu0 0.0
    %202 = vmatpush1.msra.mxu0 0.0
    %203 = vmatprep.subr.mxu0 0.0
    %204 = vmatpush1.msra.mxu0 0.0
    %205 = vmatprep.subr.mxu0 0.0
    %206 = vmatpush1.msra.mxu0 0.0
    %207 = vmatprep.subr.mxu0 0.0
    %208 = vmatpush1.msra.mxu0 0.0
    %209 = vmatprep.subr.mxu0 0.0
    %210 = vmatpush1.msra.mxu0 0.0
    %211 = vmatprep.subr.mxu0 0.0
    %212 = vmatpush1.msra.mxu0 0.0
    %213 = vmatprep.subr.mxu0 0.0
    %214 = vmatpush1.msra.mxu0 0.0
    %215 = vmatprep.subr.mxu0 0.0
    %216 = vmatpush1.msra.mxu0 0.0
    %217 = vmatprep.subr.mxu0 0.0
    %218 = vmatpush1.msra.mxu0 0.0
    %219 = vmatprep.subr.mxu0 0.0
    %220 = vmatpush1.msra.mxu0 0.0
    %221 = vmatprep.subr.mxu0 %v185
    %222 = vmatpush1.msra.mxu0 %v184
    %223 = vmatprep.subr.mxu0 %v178
    %224 = vmatpush1.msra.mxu0 %v177
    %225 = vmatprep.subr.mxu0 %v170
    %226 = vmatpush1.msra.mxu0 %v169
    %227 = vmatprep.subr.mxu0 0.0
    %228 = vmatpush2.msra.mxu0 0.0
    %229 = vmatprep.subr.mxu0 0.0
    %230 = vmatpush2.msra.mxu0 0.0
    %231 = vmatprep.subr.mxu0 0.0
    %232 = vmatpush2.msra.mxu0 0.0
    %233 = vmatprep.subr.mxu0 0.0
    %234 = vmatpush2.msra.mxu0 0.0
    %235 = vmatprep.subr.mxu0 0.0
    %236 = vmatpush2.msra.mxu0 0.0
    %237 = vmatprep.subr.mxu0 0.0
    %238 = vmatpush2.msra.mxu0 0.0
    %239 = vmatprep.subr.mxu0 0.0
    %240 = vmatpush2.msra.mxu0 0.0
    %241 = vmatprep.subr.mxu0 0.0
    %242 = vmatpush2.msra.mxu0 0.0
    %243 = vmatprep.subr.mxu0 0.0
    %244 = vmatpush2.msra.mxu0 0.0
    %245 = vmatprep.subr.mxu0 0.0
    %246 = vmatpush2.msra.mxu0 0.0
    %247 = vmatprep.subr.mxu0 0.0
    %248 = vmatpush2.msra.mxu0 0.0
    %249 = vmatprep.subr.mxu0 0.0
    %250 = vmatpush2.msra.mxu0 0.0
    %251 = vmatprep.subr.mxu0 0.0
    %252 = vmatpush2.msra.mxu0 0.0
    %253 = vmatprep.subr.mxu0 0.0
    %254 = vmatpush2.msra.mxu0 0.0
    %255 = vmatprep.subr.mxu0 0.0
    %256 = vmatpush2.msra.mxu0 0.0
    %257 = vmatprep.subr.mxu0 0.0
    %258 = vmatpush2.msra.mxu0 0.0
    %259 = vmatprep.mubr.f32.mxu0 0.0
    %260 = vmatmul.mubr.f32.gmra.mxu0 %v190
    %v261 = vpop.f32.mrf.mxu0
    %v262 = vadd.f32 0.0, %v261
    %v263 = vpop.f32.mrf.mxu0
    %v264 = vadd.f32 0.0, %v263
    %265 = vmatprep.mubr.f32.mxu0 0.0
    %266 = vmatmul.mubr.f32.gmra.mxu0 %v193
    %v267 = vpop.f32.mrf.mxu0
    %v268 = vadd.f32 0.0, %v267
    %v269 = vpop.f32.mrf.mxu0
    %v270 = vadd.f32 0.0, %v269
    %271 = vdwg.mxu0
    %s272 = scalar_lea.vmem %s2, 8
    %v273 = vld [vmem:[%s272] sm:$0xff]
    %275 = vset.pattern.permute.xlu0 0
    %276 = vperm.xlu0 %275, %v273
    %v277 = vpop.permute.xlu0 %276
    %v279 = vadd.f32 %v262, %v277
    %v280 = vadd.f32 %v264, %v277
    %s281 = sld [smem:[#allocation6 + $0x1]]
    %vm282 = vcmp.gt.f32.partialorder %v279, 0.0
    %vm283 = vcmp.gt.f32.partialorder %v280, 0.0
    %v284 = vstv %s281
    %v285 = vmul.f32 %v284, %v279
    %v286 = vmul.f32 %v284, %v280
    %v287 = vsel %vm282, %v279, %v285
    %v288 = vsel %vm283, %v280, %v286
    %v289 = vadd.f32 %v287, %v268
    %v290 = vadd.f32 %v288, %v270
    %291 = vst [vmem:[#allocation8] sm:$0xff] %v289
    %292 = vst [vmem:[#allocation8 + $0x8] sm:$0xff] %v290
    %293 = vrot.lane.b32.xlu0 %v289, 124
    %v294 = vpop.permute.xlu0 %293
    %295 = vrot.lane.b32.xlu0 %v290, 124
    %v296 = vpop.permute.xlu0 %295
    %v297 = vsel %vm183, %v294, %v296
    %v298 = vsel %vm183, %v296, %v294
    %299 = vrot.lane.b32.xlu0 %v289, 120
    %v300 = vpop.permute.xlu0 %299
    %301 = vrot.lane.b32.xlu0 %v290, 120
    %v302 = vpop.permute.xlu0 %301
    %vm303 = vcmp.lt.s32.totalorder %v56, 120
    %v304 = vsel %vm303, %v300, %v302
    %v305 = vsel %vm303, %v302, %v300
    %s306 = scalar_lea.vmem [#allocation2], 32
    %v307 = vld [vmem:[%s306] sm:$0xff]
    %v308 = vld [vmem:[%s306 + $0x8] sm:$0xff]
    %v310 = vsel %vm69, %v307, 0
    %v313 = vsel %vm69, %v308, 0
    %315 = vmatprep.subr.mxu0 0.0
    %316 = vmatpush1.msra.mxu0 0.0
    %317 = vmatprep.subr.mxu0 0.0
    %318 = vmatpush1.msra.mxu0 0.0
    %319 = vmatprep.subr.mxu0 0.0
    %320 = vmatpush1.msra.mxu0 0.0
    %321 = vmatprep.subr.mxu0 0.0
    %322 = vmatpush1.msra.mxu0 0.0
    %323 = vmatprep.subr.mxu0 0.0
    %324 = vmatpush1.msra.mxu0 0.0
    %325 = vmatprep.subr.mxu0 0.0
    %326 = vmatpush1.msra.mxu0 0.0
    %327 = vmatprep.subr.mxu0 0.0
    %328 = vmatpush1.msra.mxu0 0.0
    %329 = vmatprep.subr.mxu0 0.0
    %330 = vmatpush1.msra.mxu0 0.0
    %331 = vmatprep.subr.mxu0 0.0
    %332 = vmatpush1.msra.mxu0 0.0
    %333 = vmatprep.subr.mxu0 0.0
    %334 = vmatpush1.msra.mxu0 0.0
    %335 = vmatprep.subr.mxu0 0.0
    %336 = vmatpush1.msra.mxu0 0.0
    %337 = vmatprep.subr.mxu0 0.0
    %338 = vmatpush1.msra.mxu0 0.0
    %339 = vmatprep.subr.mxu0 0.0
    %340 = vmatpush1.msra.mxu0 0.0
    %341 = vmatprep.subr.mxu0 %v305
    %342 = vmatpush1.msra.mxu0 %v304
    %343 = vmatprep.subr.mxu0 %v298
    %344 = vmatpush1.msra.mxu0 %v297
    %345 = vmatprep.subr.mxu0 %v290
    %346 = vmatpush1.msra.mxu0 %v289
    %347 = vmatprep.subr.mxu0 0.0
    %348 = vmatpush2.msra.mxu0 0.0
    %349 = vmatprep.subr.mxu0 0.0
    %350 = vmatpush2.msra.mxu0 0.0
    %351 = vmatprep.subr.mxu0 0.0
    %352 = vmatpush2.msra.mxu0 0.0
    %353 = vmatprep.subr.mxu0 0.0
    %354 = vmatpush2.msra.mxu0 0.0
    %355 = vmatprep.subr.mxu0 0.0
    %356 = vmatpush2.msra.mxu0 0.0
    %357 = vmatprep.subr.mxu0 0.0
    %358 = vmatpush2.msra.mxu0 0.0
    %359 = vmatprep.subr.mxu0 0.0
    %360 = vmatpush2.msra.mxu0 0.0
    %361 = vmatprep.subr.mxu0 0.0
    %362 = vmatpush2.msra.mxu0 0.0
    %363 = vmatprep.subr.mxu0 0.0
    %364 = vmatpush2.msra.mxu0 0.0
    %365 = vmatprep.subr.mxu0 0.0
    %366 = vmatpush2.msra.mxu0 0.0
    %367 = vmatprep.subr.mxu0 0.0
    %368 = vmatpush2.msra.mxu0 0.0
    %369 = vmatprep.subr.mxu0 0.0
    %370 = vmatpush2.msra.mxu0 0.0
    %371 = vmatprep.subr.mxu0 0.0
    %372 = vmatpush2.msra.mxu0 0.0
    %373 = vmatprep.subr.mxu0 0.0
    %374 = vmatpush2.msra.mxu0 0.0
    %375 = vmatprep.subr.mxu0 0.0
    %376 = vmatpush2.msra.mxu0 0.0
    %377 = vmatprep.subr.mxu0 0.0
    %378 = vmatpush2.msra.mxu0 0.0
    %379 = vmatprep.mubr.f32.mxu0 0.0
    %380 = vmatmul.mubr.f32.gmra.mxu0 %v310
    %v381 = vpop.f32.mrf.mxu0
    %v382 = vadd.f32 0.0, %v381
    %v383 = vpop.f32.mrf.mxu0
    %v384 = vadd.f32 0.0, %v383
    %385 = vmatprep.mubr.f32.mxu0 0.0
    %386 = vmatmul.mubr.f32.gmra.mxu0 %v313
    %v387 = vpop.f32.mrf.mxu0
    %v388 = vadd.f32 0.0, %v387
    %v389 = vpop.f32.mrf.mxu0
    %v390 = vadd.f32 0.0, %v389
    %391 = vdwg.mxu0
    %s392 = scalar_lea.vmem %s2, 16
    %v393 = vld [vmem:[%s392] sm:$0xff]
    %395 = vset.pattern.permute.xlu0 0
    %396 = vperm.xlu0 %395, %v393
    %v397 = vpop.permute.xlu0 %396
    %v399 = vadd.f32 %v382, %v397
    %v400 = vadd.f32 %v384, %v397
    %s401 = sld [smem:[#allocation6 + $0x2]]
    %vm402 = vcmp.gt.f32.partialorder %v399, 0.0
    %vm403 = vcmp.gt.f32.partialorder %v400, 0.0
    %v404 = vstv %s401
    %v405 = vmul.f32 %v404, %v399
    %v406 = vmul.f32 %v404, %v400
    %v407 = vsel %vm402, %v399, %v405
    %v408 = vsel %vm403, %v400, %v406
    %v409 = vadd.f32 %v407, %v388
    %v410 = vadd.f32 %v408, %v390
    %411 = vst [vmem:[#allocation10] sm:$0xff] %v409
    %412 = vst [vmem:[#allocation10 + $0x8] sm:$0xff] %v410
    // Predicated region
    $region26: #{tpu_custom_call.1} parent=1 // pred_check
      _
    $region27: #{tpu_custom_call.1} parent=1 // pred_check_branch
      %414 = sbr.rel (0) target = $region29
    $region28: #{tpu_custom_call.1} parent=1 // pred_region
      %s416 = ssub.s32 256, 256
      %417 = vsyncadd [#allocation4], %s416
      %s419 = sshll.u32 [#allocation7], 4
      %s420 = int_to_ptr.vmem [resolvable:$true] %s419
      %422 = dma.vmem_to_hbm [thread:$0]  %s420, 256, %s4, [#allocation4]
    $region29: #{tpu_custom_call.1} parent=1 // pred_fallthru
      _
    // Predicated region
    $region30: #{tpu_custom_call.1} parent=1 // pred_check
      _
    $region31: #{tpu_custom_call.1} parent=1 // pred_check_branch
      %424 = sbr.rel (0) target = $region33
    $region32: #{tpu_custom_call.1} parent=1 // pred_region
      %s426 = ssub.s32 256, 256
      %427 = vsyncadd [#allocation9], %s426
      %s429 = sshll.u32 [#allocation8], 4
      %s430 = int_to_ptr.vmem [resolvable:$true] %s429
      %432 = dma.vmem_to_hbm [thread:$0]  %s430, 256, %s5, [#allocation9]
    $region33: #{tpu_custom_call.1} parent=1 // pred_fallthru
      _
    // Predicated region
    $region34: #{tpu_custom_call.1} parent=1 // pred_check
      _
    $region35: #{tpu_custom_call.1} parent=1 // pred_check_branch
      %434 = sbr.rel (0) target = $region37
    $region36: #{tpu_custom_call.1} parent=1 // pred_region
      %s436 = ssub.s32 256, 256
      %437 = vsyncadd [#allocation9], %s436
      %s439 = sshll.u32 [#allocation10], 4
      %s440 = int_to_ptr.vmem [resolvable:$true] %s439
      %442 = dma.vmem_to_hbm [thread:$0]  %s440, 256, %s6, [#allocation9]
    $region37: #{tpu_custom_call.1} parent=1 // pred_fallthru
      _
    // Predicated region
    $region38: #{tpu_custom_call.1} parent=1 // pred_check
      _
    $region39: #{tpu_custom_call.1} parent=1 // pred_check_branch
      %444 = sbr.rel (0) target = $region41
    $region40: #{tpu_custom_call.1} parent=1 // pred_region
      %445 = dma.done [#allocation4], 256
    $region41: #{tpu_custom_call.1} parent=1 // pred_fallthru
      _
    // Predicated region
    $region42: #{tpu_custom_call.1} parent=1 // pred_check
      _
    $region43: #{tpu_custom_call.1} parent=1 // pred_check_branch
      %447 = sbr.rel (0) target = $region45
    $region44: #{tpu_custom_call.1} parent=1 // pred_region
      %448 = dma.done [#allocation9], 256
    $region45: #{tpu_custom_call.1} parent=1 // pred_fallthru
      _
    // Predicated region
    $region46: #{tpu_custom_call.1} parent=1 // pred_check
      _
    $region47: #{tpu_custom_call.1} parent=1 // pred_check_branch
      %450 = sbr.rel (0) target = $region49
    $region48: #{tpu_custom_call.1} parent=1 // pred_region
      %451 = dma.done [#allocation9], 256
    $region49: #{tpu_custom_call.1} parent=1 // pred_fallthru
      _
    %452 = vsyncpa [#allocation3], 1
    %453 = vsyncpa [#allocation4], 1
    %454 = vsyncpa [#allocation9], 1
    %455 = vsyncpa [#allocation5], 1

</llo_original>
